<compile_context>
chip_gen: v7x
topology: tpu7x:2x2x1
jax: 0.10.0
libtpu: 0.0.40
codegen_flags: <defaults>
</compile_context>

<pallas_src>
import jax
import jax.numpy as jnp
from jax.experimental import pallas as pl
from jax.experimental.pallas import tpu as pltpu

LANES = 128      # vreg lane width (last dim)
SUBLANES = 8     # f32 sublane tile (x arrives f32 at the pallas_call boundary)


def _round_up(n, m):
    return ((n + m - 1) // m) * m


def gating_kernel(x_ref, w_ref, b_ref, o_ref):
    # x: (TB, D) f32  -> bf16 cast on the VPU (free under the memory bound).
    # w: (D, Epad) bf16 resident; b: (1, Epad) f32 resident (-inf pad lanes).
    logits = jnp.dot(
        x_ref[...].astype(jnp.bfloat16), w_ref[...],
        preferred_element_type=jnp.float32,
    ) + b_ref[...]                                   # pad lanes: 0 + (-inf) = -inf
    m = jnp.max(logits, axis=1, keepdims=True)       # finite (real lanes present)
    e = jnp.exp(logits - m)                          # pad lanes -> exp(-inf) = 0
    denom = jnp.sum(e, axis=1, keepdims=True)
    probs = e * pl.reciprocal(denom, approx=False)   # exact f32 normalization
    # Store only the real expert columns: packed (TB, E) HBM output.
    o_ref[...] = probs[:, : o_ref.shape[1]].astype(o_ref.dtype)


def prepare_gating_params(w_t, b):
    """Pad/cast the (tiny, constant) gate parameters once at init.

    w_t: (D, E) f32  (pre-transposed nn.Linear weight), b: (E,) or (1, E) f32.
    Returns (w_p bf16 (D, Epad), b_p f32 (1, Epad), E).
    """
    D, E = w_t.shape
    Epad = _round_up(E, LANES)
    w_p = jnp.pad(w_t, ((0, 0), (0, Epad - E))).astype(jnp.bfloat16)
    b_p = jnp.pad(
        jnp.reshape(b, (1, E)).astype(jnp.float32),
        ((0, 0), (0, Epad - E)),
        constant_values=-jnp.inf,
    )
    return w_p, b_p, E


def gating_network(x, w_p, b_p, num_experts, *, tile_b=8192):
    """x: (B, D) f32; w_p/b_p from prepare_gating_params. Returns (B, E) f32 probs."""
    B, D = x.shape
    Epad = w_p.shape[1]
    E = num_experts

    # Batch tiling: large tiles (step overhead << DMA), capped so tiny batches
    # don't over-pad; sublane-aligned for the f32 input.
    TB = min(tile_b, _round_up(B, SUBLANES))
    Bp = _round_up(B, TB)
    x_p = x if Bp == B else jnp.pad(x, ((0, Bp - B), (0, 0)))

    out = pl.pallas_call(
        gating_kernel,
        out_shape=jax.ShapeDtypeStruct((Bp, E), jnp.float32),
        grid_spec=pltpu.PrefetchScalarGridSpec(
            num_scalar_prefetch=0,
            grid=(Bp // TB,),
            in_specs=[
                pl.BlockSpec((TB, D), lambda i: (i, 0)),      # streamed over batch
                pl.BlockSpec((D, Epad), lambda i: (0, 0)),    # resident weight
                pl.BlockSpec((1, Epad), lambda i: (0, 0)),    # resident bias
            ],
            # Packed output: last dim == full array dim (E), so the narrow
            # block is legal; stores are VMEM-side and hidden under DMA.
            out_specs=pl.BlockSpec((TB, E), lambda i: (i, 0)),
        ),
        compiler_params=pltpu.CompilerParams(
            # Parallel batch axis: shards tiles across both TensorCores on
            # v7x; harmless no-op on single-core v5e/v6e.
            dimension_semantics=("parallel",),
        ),
    )(x_p, w_p, b_p)

    return out if Bp == B else out[:B]


def reference(x, w_t, b):
    logits = x @ w_t + jnp.reshape(b, (1, -1))
    return jax.nn.softmax(logits, axis=1)


if __name__ == "__main__":
    # Small shapes consistent with the module: batch=8, input_dim=32, num_experts=8.
    B, D, E = 8, 32, 8
    key = jax.random.PRNGKey(0)
    kx, kw, kb = jax.random.split(key, 3)

    x = jax.random.normal(kx, (B, D), dtype=jnp.float32)
    # Deterministic synthetic params (nn.Linear(input_dim, num_experts)):
    # PyTorch weight is (E, D); we keep it pre-transposed as (D, E).
    bound = 1.0 / (D ** 0.5)
    w_t = jax.random.uniform(kw, (D, E), minval=-bound, maxval=bound, dtype=jnp.float32)
    b = jax.random.uniform(kb, (1, E), minval=-bound, maxval=bound, dtype=jnp.float32)

    w_p, b_p, n_experts = prepare_gating_params(w_t, b)

    out = jax.block_until_ready(gating_network(x, w_p, b_p, n_experts))
    ref = reference(x, w_t, b)
    assert out.shape == (B, E)
    # bf16 MXU inputs -> compare against the f32 reference at bf16-level tolerance.
    assert jnp.allclose(out, ref, atol=5e-3, rtol=5e-3)
    # Exact f32 softmax normalization: rows sum to 1.
    assert jnp.allclose(jnp.sum(out, axis=1), jnp.ones((B,)), atol=1e-5)

    # Second check: non-multiple batch with multiple grid steps + tail padding.
    B2 = 300
    x2 = jax.random.normal(jax.random.PRNGKey(1), (B2, D), dtype=jnp.float32)
    out2 = jax.block_until_ready(gating_network(x2, w_p, b_p, n_experts, tile_b=128))
    ref2 = reference(x2, w_t, b)
    assert out2.shape == (B2, E)
    assert jnp.allclose(out2, ref2, atol=5e-3, rtol=5e-3)
    assert jnp.allclose(jnp.sum(out2, axis=1), jnp.ones((B2,)), atol=1e-5)

    print("KERNEL_OK")
</pallas_src>

<mosaic_0001>
module attributes {stable_mosaic.version = 11 : i64} {
  func.func @gating_kernel(%arg0: i32, %arg1: memref<8x32xf32, #tpu.memory_space<vmem>>, %arg2: memref<32x128xbf16, #tpu.memory_space<vmem>>, %arg3: memref<1x128xf32, #tpu.memory_space<vmem>>, %arg4: memref<8x8xf32, #tpu.memory_space<vmem>>) attributes {dimension_semantics = [#tpu.dimension_semantics<parallel>], iteration_bounds = array<i64: 1>, scalar_prefetch = 0 : i64, scratch_operands = 0 : i64, tpu.core_type = #tpu.core_type<tc>, window_params = [{transform_indices = @transform_0, window_bounds = array<i64: 8, 32>}, {pipeline_mode = #tpu.pipeline_mode<synchronous>, transform_indices = @transform_1, window_bounds = array<i64: 32, 128>}, {pipeline_mode = #tpu.pipeline_mode<synchronous>, transform_indices = @transform_2, window_bounds = array<i64: 1, 128>}, {transform_indices = @transform_3, window_bounds = array<i64: 8, 8>}]} {
    %c0 = arith.constant 0 : index
    %c0_0 = arith.constant 0 : index
    %0 = vector.load %arg1[%c0, %c0_0] : memref<8x32xf32, #tpu.memory_space<vmem>>, vector<8x32xf32>
    %1 = arith.truncf %0 : vector<8x32xf32> to vector<8x32xbf16>
    %c0_1 = arith.constant 0 : index
    %c0_2 = arith.constant 0 : index
    %2 = vector.load %arg2[%c0_1, %c0_2] : memref<32x128xbf16, #tpu.memory_space<vmem>>, vector<32x128xbf16>
    %cst = arith.constant dense<0.000000e+00> : vector<8x128xf32>
    %3 = tpu.matmul %1, %2, %cst {dimension_numbers = #tpu.dot_dimension_numbers<[1], [0], [0], [1], [0, 0, 1, 1], [], []>} : vector<8x32xbf16>, vector<32x128xbf16>, vector<8x128xf32> -> vector<8x128xf32>
    %c0_3 = arith.constant 0 : index
    %c0_4 = arith.constant 0 : index
    %4 = vector.load %arg3[%c0_3, %c0_4] : memref<1x128xf32, #tpu.memory_space<vmem>>, vector<1x128xf32>
    %5 = vector.broadcast %4 : vector<1x128xf32> to vector<8x128xf32>
    %6 = arith.addf %3, %5 : vector<8x128xf32>
    %cst_5 = arith.constant dense<0xFF800000> : vector<8xf32>
    %7 = vector.multi_reduction <maximumf>, %6, %cst_5 [1] : vector<8x128xf32> to vector<8xf32>
    %8 = vector.shape_cast %7 : vector<8xf32> to vector<8x1xf32>
    %9 = vector.broadcast %8 : vector<8x1xf32> to vector<8x128xf32>
    %10 = arith.subf %6, %9 : vector<8x128xf32>
    %11 = math.exp %10 : vector<8x128xf32>
    %cst_6 = arith.constant dense<0.000000e+00> : vector<8xf32>
    %12 = vector.multi_reduction <add>, %11, %cst_6 [1] : vector<8x128xf32> to vector<8xf32>
    %13 = vector.shape_cast %12 : vector<8xf32> to vector<8x1xf32>
    %14 = tpu.reciprocal %13 : vector<8x1xf32> -> vector<8x1xf32>
    %15 = vector.broadcast %14 : vector<8x1xf32> to vector<8x128xf32>
    %16 = arith.mulf %11, %15 : vector<8x128xf32>
    %17 = vector.extract_strided_slice %16 {offsets = [0, 0], sizes = [8, 8], strides = [1, 1]} : vector<8x128xf32> to vector<8x8xf32>
    %c0_7 = arith.constant 0 : index
    %c0_8 = arith.constant 0 : index
    %18 = vector.load %arg4[%c0_7, %c0_8] : memref<8x8xf32, #tpu.memory_space<vmem>>, vector<8x8xf32>
    tpu.vector_store %arg4[%c0_7, %c0_8], %17 {strides = array<i32>} : memref<8x8xf32, #tpu.memory_space<vmem>>, vector<8x8xf32>,
    return
  }
  func.func @transform_0(%arg0: i32) -> (i32, i32) {
    %c0_i32 = arith.constant 0 : i32
    %c0_i32_0 = arith.constant 0 : i32
    return %arg0, %c0_i32 : i32, i32
  }
  func.func @transform_1(%arg0: i32) -> (i32, i32) {
    %c0_i32 = arith.constant 0 : i32
    %c0_i32_0 = arith.constant 0 : i32
    %c0_i32_1 = arith.constant 0 : i32
    return %c0_i32, %c0_i32_0 : i32, i32
  }
  func.func @transform_2(%arg0: i32) -> (i32, i32) {
    %c0_i32 = arith.constant 0 : i32
    %c0_i32_0 = arith.constant 0 : i32
    %c0_i32_1 = arith.constant 0 : i32
    return %c0_i32, %c0_i32_0 : i32, i32
  }
  func.func @transform_3(%arg0: i32) -> (i32, i32) {
    %c0_i32 = arith.constant 0 : i32
    %c0_i32_0 = arith.constant 0 : i32
    return %arg0, %c0_i32 : i32, i32
  }
}

</mosaic_0001>

<llo_original>
// kernel: tpu_custom_call.1
$region0: #{tpu_custom_call.1}
  #allocation0 [shape = 'u32[]', space=smem, size = 0x4, offset = 0x4, fixed_abs, tag = 'smem constant byte address 0x4 - core index']
  #allocation1 [shape = 'u32[144,128]{1,0:T(1,128)}', space=vmem, size = 0x12000, scoped, tag = 'internal scratch']
  %s0 = inlined_call_operand.hbm [shape: f32[8,32], index: 0, kind: input, shape index: {}]
  %s1 = inlined_call_operand.hbm [shape: bf16[32,128], index: 1, kind: input, shape index: {}]
  %s2 = inlined_call_operand.vmem [shape: f32[1,128], index: 2, kind: input, shape index: {}]
  %s3 = inlined_call_operand.hbm [shape: f32[8,8], index: 3, kind: output, shape index: {}]
  %s4 = sld [smem:[#allocation0]]
  $region30: #{tpu_custom_call.1} parent=0
    _
  %s6 = ssub.s32 1, %s4
  %s7 = scalar_select 0, %s6, %s4
  $region1: #{tpu_custom_call.1} parent=0
    #allocation2 [shape = 'u8[4096]{0}', space=vmem, size = 0x1000, scoped, tag = 'input window, operand 0, single buffered']
    #allocation3 [shape = 's32[1]{0}', space=sflag, size = 0x4, scoped, tag = 'scoped memory for tpu_custom_call.1']
    #allocation4 [shape = 's32[1]{0}', space=sflag, size = 0x4, scoped, tag = 'scoped memory for tpu_custom_call.1']
    #allocation5 [shape = 'u8[8192]{0}', space=vmem, size = 0x2000, scoped, tag = 'input window, operand 1, single buffered']
    #allocation6 [shape = 's32[1]{0}', space=sflag, size = 0x4, scoped, tag = 'scoped memory for tpu_custom_call.1']
    #allocation7 [shape = 'u8[4096]{0}', space=vmem, size = 0x1000, scoped, tag = 'output window, operand 0, single buffered']
    %8 = vsyncpa [#allocation3], 0
    %9 = vsyncpa [#allocation6], 0
    %10 = vsyncpa [#allocation4], 0
    // Predicated region
    $region2: #{tpu_custom_call.1} parent=1 // pred_check
      _
    $region3: #{tpu_custom_call.1} parent=1 // pred_check_branch
      %12 = sbr.rel (0) target = $region5
    $region4: #{tpu_custom_call.1} parent=1 // pred_region
      %s14 = ssub.s32 128, 128
      %15 = vsyncadd [#allocation3], %s14
      %s17 = sshll.u32 [#allocation2], 4
      %s18 = int_to_ptr.vmem [resolvable:$true] %s17
      %20 = dma.hbm_to_vmem [thread:$0]  %s0, 128, %s18, [#allocation3]
    $region5: #{tpu_custom_call.1} parent=1 // pred_fallthru
      _
    // Predicated region
    $region6: #{tpu_custom_call.1} parent=1 // pred_check
      _
    $region7: #{tpu_custom_call.1} parent=1 // pred_check_branch
      %22 = sbr.rel (0) target = $region9
    $region8: #{tpu_custom_call.1} parent=1 // pred_region
      %s24 = ssub.s32 256, 256
      %25 = vsyncadd [#allocation6], %s24
      %s26 = sshll.u32 [#allocation5], 4
      %s27 = int_to_ptr.vmem [resolvable:$true] %s26
      %32 = dma.hbm_to_vmem [thread:$0]  %s1, 256, %s27, [#allocation6], 64, 64, 4
    $region9: #{tpu_custom_call.1} parent=1 // pred_fallthru
      _
    // Predicated region
    $region10: #{tpu_custom_call.1} parent=1 // pred_check
      _
    $region11: #{tpu_custom_call.1} parent=1 // pred_check_branch
      %34 = sbr.rel (0) target = $region13
    $region12: #{tpu_custom_call.1} parent=1 // pred_region
      _
    $region13: #{tpu_custom_call.1} parent=1 // pred_fallthru
      _
    // Predicated region
    $region14: #{tpu_custom_call.1} parent=1 // pred_check
      _
    $region15: #{tpu_custom_call.1} parent=1 // pred_check_branch
      %36 = sbr.rel (0) target = $region17
    $region16: #{tpu_custom_call.1} parent=1 // pred_region
      %37 = dma.done [#allocation3], 128
    $region17: #{tpu_custom_call.1} parent=1 // pred_fallthru
      _
    // Predicated region
    $region18: #{tpu_custom_call.1} parent=1 // pred_check
      _
    $region19: #{tpu_custom_call.1} parent=1 // pred_check_branch
      %39 = sbr.rel (0) target = $region21
    $region20: #{tpu_custom_call.1} parent=1 // pred_region
      %40 = dma.done [#allocation6], 256
    $region21: #{tpu_custom_call.1} parent=1 // pred_fallthru
      _
    %v42 = vld [vmem:[#allocation2] sm:$0xff]
    %v43 = vpack.c.bf16 %v42, %v42
    %v44 = vld [vmem:[#allocation5] sm:$0xf]
    %v45 = vld [vmem:[#allocation5 + $0x4] sm:$0xf]
    %v46 = vld [vmem:[#allocation5 + $0x8] sm:$0xf]
    %v47 = vld [vmem:[#allocation5 + $0xc] sm:$0xf]
    %v48 = vld [vmem:[%s2] sm:$0x1]
    %v50 = vlaneseq
    %v51 = vshrl.u32 %v50, 7
    %v52 = vsub.s32 0, %v51
    %v53 = vrot.slane %v48, %v52
    %v59 = vunpack.c.l.b16 %v44
    %v60 = vunpack.c.l.b16 %v45
    %v61 = vunpack.c.l.b16 %v46
    %v62 = vunpack.c.l.b16 %v47
    %v63 = vpack.c.b16 %v60, %v59
    %v64 = vpack.c.b16 %v62, %v61
    %vm67 = vcmask 261120
    %v69 = vsel %vm67, %v43, 0
    %71 = vmatprep.subr.bf16.mxu0 0
    %72 = vmatpush1.bf16.msra.mxu0 %v63
    %73 = vmatprep.subr.bf16.mxu0 0
    %74 = vmatpush1.bf16.msra.mxu0 %v64
    %75 = vmatprep.subr.bf16.mxu0 0
    %76 = vmatpush1.bf16.msra.mxu0 0
    %77 = vmatprep.subr.bf16.mxu0 0
    %78 = vmatpush1.bf16.msra.mxu0 0
    %79 = vmatprep.subr.bf16.mxu0 0
    %80 = vmatpush1.bf16.msra.mxu0 0
    %81 = vmatprep.subr.bf16.mxu0 0
    %82 = vmatpush1.bf16.msra.mxu0 0
    %83 = vmatprep.subr.bf16.mxu0 0
    %84 = vmatpush1.bf16.msra.mxu0 0
    %85 = vmatprep.subr.bf16.mxu0 0
    %86 = vmatpush1.bf16.msra.mxu0 0
    %87 = vmatprep.subr.bf16.mxu0 0
    %88 = vmatpush1.bf16.msra.mxu0 0
    %89 = vmatprep.subr.bf16.mxu0 0
    %90 = vmatpush1.bf16.msra.mxu0 0
    %91 = vmatprep.subr.bf16.mxu0 0
    %92 = vmatpush1.bf16.msra.mxu0 0
    %93 = vmatprep.subr.bf16.mxu0 0
    %94 = vmatpush1.bf16.msra.mxu0 0
    %95 = vmatprep.subr.bf16.mxu0 0
    %96 = vmatpush1.bf16.msra.mxu0 0
    %97 = vmatprep.subr.bf16.mxu0 0
    %98 = vmatpush1.bf16.msra.mxu0 0
    %99 = vmatprep.subr.bf16.mxu0 0
    %100 = vmatpush1.bf16.msra.mxu0 0
    %101 = vmatprep.subr.bf16.mxu0 0
    %102 = vmatpush1.bf16.msra.mxu0 0
    %103 = vmatprep.mubr.bf16.mxu0 0
    %104 = vmatmul.mubr.bf16.gmra.mrb[0].mxu0 %v69
    %v105 = vpop.f32.mrb[0].mxu0
    %v106 = vadd.f32 %v53, %v105
    %v107 = vpop.f32.mrb[0].mxu0
    %v108 = vpop.f32.mrb[0].mxu0
    %v109 = vpop.f32.mrb[0].mxu0
    %110 = vdwg.mxu0
    %111 = vmax.xlane.f32.xlu0 %v106
    %v112 = vpop.xlane.xlu0 %111
    %v113 = vsub.f32 %v106, %v112
    %v114 = vmul.f32 %v113, 1.442695
    %v115 = vpow.pop %v114
    %116 = vadd.xlane.f32.xlu0 %v115
    %v117 = vpop.xlane.xlu0 %116
    %v118 = vrcp.pop %v117
    %v119 = vmul.f32 %v115, %v118
    %vm120 = vcmask 64512
    %121 = vst.msk [vmem:[#allocation7] sm:$0xff] %vm120, %v119
    // Predicated region
    $region22: #{tpu_custom_call.1} parent=1 // pred_check
      _
    $region23: #{tpu_custom_call.1} parent=1 // pred_check_branch
      %123 = sbr.rel (0) target = $region25
    $region24: #{tpu_custom_call.1} parent=1 // pred_region
      %s125 = ssub.s32 128, 128
      %126 = vsyncadd [#allocation4], %s125
      %s128 = sshll.u32 [#allocation7], 4
      %s129 = int_to_ptr.vmem [resolvable:$true] %s128
      %131 = dma.vmem_to_hbm [thread:$0]  %s129, 128, %s3, [#allocation4]
    $region25: #{tpu_custom_call.1} parent=1 // pred_fallthru
      _
    // Predicated region
    $region26: #{tpu_custom_call.1} parent=1 // pred_check
      _
    $region27: #{tpu_custom_call.1} parent=1 // pred_check_branch
      %133 = sbr.rel (0) target = $region29
    $region28: #{tpu_custom_call.1} parent=1 // pred_region
      %134 = dma.done [#allocation4], 128
    $region29: #{tpu_custom_call.1} parent=1 // pred_fallthru
      _
    %135 = vsyncpa [#allocation3], 1
    %136 = vsyncpa [#allocation6], 1
    %137 = vsyncpa [#allocation4], 1

</llo_original>
